<compile_context>
chip_gen: v5e
topology: v5e:2x2
jax: 0.10.0
libtpu: 0.0.40
codegen_flags: <defaults>
</compile_context>

<pallas_src>
import math

import jax
import jax.numpy as jnp
from jax.experimental import pallas as pl
from jax.experimental.pallas import tpu as pltpu  # noqa: F401  (TPU backend)

# ----------------------------- model dims -----------------------------------
B = 2            # batch
S = 8            # sequence length
BS = B * S       # flattened rows
H = 32           # hidden size
NH = 2           # attention heads
HD = H // NH     # head dim
F = 64           # FFN intermediate size
C = 3            # num_classes
CP = 128         # lane-dense padded classifier width
VOCAB = 100
VOCAB_PAD = 128  # lane/one-hot padded vocab

# ---- bf16 weight slab row offsets (all slices are tile aligned) -------------
R_EMB = 0
R_WQKV = R_EMB + VOCAB_PAD       # 128
R_WO = R_WQKV + H                # 160
R_W1 = R_WO + H                  # 192
R_W2 = R_W1 + H                  # 224
R_WP = R_W2 + F                  # 288
R_WOUT = R_WP + H                # 320
W_ROWS = R_WOUT + H              # 352

# ---- f32 bias/const slab row offsets ----------------------------------------
F_POS = 0                        # (BS, H)  position emb tiled over batch
F_BLK = F_POS + BS               # (BS, BS) same-batch block bias {0, -1e9}
F_BQKV = F_BLK + BS              # (1, 3H)  fused QKV bias
F_B1 = F_BQKV + 1                # (1, F)
F_BOUT = F_B1 + 1                # (1, CP)
F_VEC = F_BOUT + 1               # (7, H)   bo, ln1g, ln1b, b2, ln2g, ln2b, bp
F_ROWS = F_VEC + 7               # 42


# ------------------------- Pallas kernel -------------------------------------
def _layernorm(x, gamma, beta, eps=1e-12):
    mu = jnp.mean(x, axis=-1, keepdims=True)
    var = jnp.mean((x - mu) ** 2, axis=-1, keepdims=True)
    return (x - mu) * jax.lax.rsqrt(var + eps) * gamma + beta


def toxic_fused_kernel(ids_ref, mask_ref, w_ref, f_ref, out_ref):
    """Fused embedding + encoder layer + BERT pooler + classifier head.

    ids_ref  : (BS, 1)       int32  token ids (batch flattened into rows)
    mask_ref : (1, BS)       int32  attention mask {0,1}
    w_ref    : (W_ROWS, 128) bf16   weight slab (see R_* row offsets)
    f_ref    : (F_ROWS, 128) f32    bias/const slab (see F_* row offsets)
    out_ref  : (BS, CP)      f32    lane/sublane-dense logits (all token rows)
    """
    f32, bf16 = jnp.float32, jnp.bfloat16

    # ---- embedding gather as a one-hot matmul (no XLA gather launch) --------
    ids = ids_ref[...]                                            # (BS, 1) i32
    lane = jax.lax.broadcasted_iota(jnp.int32, (BS, VOCAB_PAD), 1)
    onehot = jnp.where(lane == ids, 1.0, 0.0).astype(bf16)        # (BS, 128)
    emb_w = w_ref[R_EMB:R_EMB + VOCAB_PAD, 0:H]                   # (128, H) bf16
    pos = f_ref[F_POS:F_POS + BS, 0:H]                            # (BS, H)  f32
    x = jnp.dot(onehot, emb_w, preferred_element_type=f32) + pos  # (BS, H)  f32
    x_bf = x.astype(bf16)

    # ---- fused QKV projection: one MXU dot -----------------------------------
    wqkv = w_ref[R_WQKV:R_WQKV + H, 0:3 * H]                      # (H, 3H) bf16
    bqkv = f_ref[F_BQKV:F_BQKV + 1, 0:3 * H]                      # (1, 3H) f32
    qkv = jnp.dot(x_bf, wqkv, preferred_element_type=f32) + bqkv  # (BS, 3H)

    # ---- attention bias: same-batch block mask + key padding mask ------------
    maskf = mask_ref[...].astype(f32)                             # (1, BS)
    blk = f_ref[F_BLK:F_BLK + BS, 0:BS]                           # (BS, BS) {0,-1e9}
    bias = blk + (1.0 - maskf) * (-1e9)                           # (BS, BS)

    scale = 1.0 / math.sqrt(HD)
    vec = f_ref[F_VEC:F_VEC + 7, 0:H]                             # (7, H) f32

    # ---- batch-fused multi-head self-attention --------------------------------
    ctx_heads = []
    for h in range(NH):                                           # static unroll
        q = qkv[:, h * HD:(h + 1) * HD].astype(bf16)
        k = qkv[:, H + h * HD:H + (h + 1) * HD].astype(bf16)
        v = qkv[:, 2 * H + h * HD:2 * H + (h + 1) * HD].astype(bf16)
        s = jax.lax.dot_general(q, k, (((1,), (1,)), ((), ())),
                                preferred_element_type=f32) * scale + bias
        s = s - jnp.max(s, axis=-1, keepdims=True)
        p = jnp.exp(s)
        p = p * pl.reciprocal(jnp.sum(p, axis=-1, keepdims=True), approx=True)
        ctx_heads.append(jnp.dot(p.astype(bf16), v, preferred_element_type=f32))
    ctx = jnp.concatenate(ctx_heads, axis=-1).astype(bf16)        # (BS, H)

    # ---- attention output projection + residual + LN1 -------------------------
    wo = w_ref[R_WO:R_WO + H, 0:H]
    attn = jnp.dot(ctx, wo, preferred_element_type=f32) + vec[0:1, :]
    h1 = _layernorm(x + attn, vec[1:2, :], vec[2:3, :])

    # ---- feed-forward ----------------------------------------------------------
    w1 = w_ref[R_W1:R_W1 + H, 0:F]
    b1 = f_ref[F_B1:F_B1 + 1, 0:F]
    w2 = w_ref[R_W2:R_W2 + F, 0:H]
    ff = jnp.dot(h1.astype(bf16), w1, preferred_element_type=f32) + b1
    ff = jax.nn.gelu(ff)   # tanh approximation (see TODO at top)
    ff = jnp.dot(ff.astype(bf16), w2, preferred_element_type=f32) + vec[3:4, :]
    h2 = _layernorm(h1 + ff, vec[4:5, :], vec[5:6, :])

    # ---- pooler + classifier over ALL rows (CLS rows picked in wrapper) -------
    wp = w_ref[R_WP:R_WP + H, 0:H]
    wout = w_ref[R_WOUT:R_WOUT + H, 0:CP]
    bout = f_ref[F_BOUT:F_BOUT + 1, 0:CP]
    pooled = jnp.tanh(jnp.dot(h2.astype(bf16), wp, preferred_element_type=f32)
                      + vec[6:7, :])
    # Dropout(p=0.2): identity at inference time.
    logits = jnp.dot(pooled.astype(bf16), wout, preferred_element_type=f32) + bout
    out_ref[...] = logits                                         # (BS, CP) full-tile store


# ----------------------------- wrapper ----------------------------------------
def toxic_model_forward(toxic_ids, toxic_mask, packed):
    """toxic_ids: (B, S) int32, toxic_mask: (B, S) {0,1}. Returns (B, C) logits."""
    ids = toxic_ids.reshape(BS, 1).astype(jnp.int32)    # free reshape
    mask = toxic_mask.reshape(1, BS).astype(jnp.int32)  # free reshape

    logits_pad = pl.pallas_call(
        toxic_fused_kernel,
        out_shape=jax.ShapeDtypeStruct((BS, CP), jnp.float32),
    )(ids, mask, packed["wslab"], packed["fslab"])

    # [CLS] token of each sequence lives at row b*S; classes are lanes [:C].
    return logits_pad.reshape(B, S, CP)[:, 0, :C]


# --------------------------- parameter init / packing -------------------------
def init_params(key):
    ks = jax.random.split(key, 16)
    s = 0.02
    return {
        "tok_emb": s * jax.random.normal(ks[0], (VOCAB, H), jnp.float32),
        "pos_emb": s * jax.random.normal(ks[1], (S, H), jnp.float32),
        "wq": s * jax.random.normal(ks[2], (H, H), jnp.float32),
        "bq": jnp.zeros((H,), jnp.float32),
        "wk": s * jax.random.normal(ks[3], (H, H), jnp.float32),
        "bk": jnp.zeros((H,), jnp.float32),
        "wv": s * jax.random.normal(ks[4], (H, H), jnp.float32),
        "bv": jnp.zeros((H,), jnp.float32),
        "wo": s * jax.random.normal(ks[5], (H, H), jnp.float32),
        "bo": jnp.zeros((H,), jnp.float32),
        "ln1g": jnp.ones((H,), jnp.float32),
        "ln1b": jnp.zeros((H,), jnp.float32),
        "w1": s * jax.random.normal(ks[6], (H, F), jnp.float32),
        "b1": jnp.zeros((F,), jnp.float32),
        "w2": s * jax.random.normal(ks[7], (F, H), jnp.float32),
        "b2": jnp.zeros((H,), jnp.float32),
        "ln2g": jnp.ones((H,), jnp.float32),
        "ln2b": jnp.zeros((H,), jnp.float32),
        "wp": s * jax.random.normal(ks[8], (H, H), jnp.float32),
        "bp": jnp.zeros((H,), jnp.float32),
        "wout": s * jax.random.normal(ks[9], (H, C), jnp.float32),
        "bout": jnp.zeros((C,), jnp.float32),
    }


def _pad_lanes(a, width=128):
    r, c = a.shape
    return jnp.zeros((r, width), a.dtype).at[:, :c].set(a)


def pack_params(p):
    """One-time repack into two slabs: a 128-lane bf16 weight slab and a
    128-lane f32 bias/const slab (4 kernel operands total)."""
    bf16 = jnp.bfloat16

    # fused QKV weight (H, 3H): q | k | v, head h = lanes [h*HD,(h+1)*HD) of each part
    wqkv = jnp.concatenate([p["wq"], p["wk"], p["wv"]], axis=1)           # (H, 3H)
    bqkv = jnp.concatenate([p["bq"], p["bk"], p["bv"]], axis=0)[None, :]  # (1, 3H)

    tok_emb_pad = jnp.zeros((VOCAB_PAD, H), jnp.float32).at[:VOCAB, :].set(p["tok_emb"])
    wout_pad = jnp.zeros((H, CP), jnp.float32).at[:, :C].set(p["wout"])
    bout_pad = jnp.zeros((1, CP), jnp.float32).at[0, :C].set(p["bout"])

    wslab = jnp.concatenate([
        _pad_lanes(tok_emb_pad.astype(bf16)),   # rows [R_EMB, R_WQKV)
        _pad_lanes(wqkv.astype(bf16)),          # rows [R_WQKV, R_WO)
        _pad_lanes(p["wo"].astype(bf16)),       # rows [R_WO, R_W1)
        _pad_lanes(p["w1"].astype(bf16)),       # rows [R_W1, R_W2)
        _pad_lanes(p["w2"].astype(bf16)),       # rows [R_W2, R_WP)
        _pad_lanes(p["wp"].astype(bf16)),       # rows [R_WP, R_WOUT)
        _pad_lanes(wout_pad.astype(bf16)),      # rows [R_WOUT, W_ROWS)
    ], axis=0)
    assert wslab.shape == (W_ROWS, 128)

    # same-batch block bias: 0 inside a batch's (S,S) block, -1e9 across batches
    rows = jnp.arange(BS) // S
    blk = jnp.where(rows[:, None] == rows[None, :], 0.0, -1e9).astype(jnp.float32)

    vecs = jnp.stack([p["bo"], p["ln1g"], p["ln1b"],
                      p["b2"], p["ln2g"], p["ln2b"], p["bp"]], axis=0)    # (7, H)

    fslab = jnp.concatenate([
        _pad_lanes(jnp.tile(p["pos_emb"], (B, 1))),   # rows [F_POS, F_BLK)
        _pad_lanes(blk),                              # rows [F_BLK, F_BQKV)
        _pad_lanes(bqkv),                             # row  F_BQKV
        _pad_lanes(p["b1"][None, :]),                 # row  F_B1
        _pad_lanes(bout_pad),                         # row  F_BOUT
        _pad_lanes(vecs),                             # rows [F_VEC, F_ROWS)
    ], axis=0)
    assert fslab.shape == (F_ROWS, 128)

    return {"wslab": wslab, "fslab": fslab}


# --------------------------------- main ----------------------------------------
if __name__ == "__main__":
    key = jax.random.PRNGKey(0)
    k_ids, k_params = jax.random.split(key)

    toxic_ids = jax.random.randint(k_ids, (B, S), 0, VOCAB, dtype=jnp.int32)
    # last two tokens of the second example are padding
    toxic_mask = jnp.ones((B, S), jnp.int32).at[1, 6:].set(0)

    packed = pack_params(init_params(k_params))

    logits = toxic_model_forward(toxic_ids, toxic_mask, packed)
    logits = jax.block_until_ready(logits)
    assert logits.shape == (B, C) and logits.dtype == jnp.float32
    assert bool(jnp.all(jnp.isfinite(logits)))
    print("KERNEL_OK")
</pallas_src>

<mosaic_0001>
module attributes {stable_mosaic.version = 11 : i64} {
  func.func @toxic_fused_kernel(%arg0: memref<16x1xi32, #tpu.memory_space<vmem>>, %arg1: memref<1x16xi32, #tpu.memory_space<vmem>>, %arg2: memref<352x128xbf16, #tpu.memory_space<vmem>>, %arg3: memref<42x128xf32, #tpu.memory_space<vmem>>, %arg4: memref<16x128xf32, #tpu.memory_space<vmem>>) attributes {dimension_semantics = [], scalar_prefetch = 0 : i64, scratch_operands = 0 : i64, tpu.core_type = #tpu.core_type<tc>} {
    %c0 = arith.constant 0 : index
    %c0_0 = arith.constant 0 : index
    %0 = vector.load %arg0[%c0, %c0_0] : memref<16x1xi32, #tpu.memory_space<vmem>>, vector<16x1xi32>
    %1 = tpu.iota {dimensions = array<i32: 1>} : vector<16x128xi32>
    %2 = vector.broadcast %0 : vector<16x1xi32> to vector<16x128xi32>
    %3 = arith.cmpi eq, %1, %2 : vector<16x128xi32>
    %cst = arith.constant 1.000000e+00 : f32
    %cst_1 = arith.constant 0.000000e+00 : f32
    %4 = vector.broadcast %cst : f32 to vector<16x128xf32>
    %5 = vector.broadcast %cst_1 : f32 to vector<16x128xf32>
    %6 = arith.select %3, %4, %5 : vector<16x128xi1>, vector<16x128xf32>
    %7 = arith.truncf %6 : vector<16x128xf32> to vector<16x128xbf16>
    %c0_2 = arith.constant 0 : index
    %c0_3 = arith.constant 0 : index
    %8 = vector.load %arg2[%c0_2, %c0_3] : memref<352x128xbf16, #tpu.memory_space<vmem>>, vector<128x32xbf16>
    %c0_4 = arith.constant 0 : index
    %c0_5 = arith.constant 0 : index
    %9 = vector.load %arg3[%c0_4, %c0_5] : memref<42x128xf32, #tpu.memory_space<vmem>>, vector<16x32xf32>
    %cst_6 = arith.constant dense<0.000000e+00> : vector<16x32xf32>
    %10 = tpu.matmul %7, %8, %cst_6 {dimension_numbers = #tpu.dot_dimension_numbers<[1], [0], [0], [1], [0, 0, 1, 1], [], []>} : vector<16x128xbf16>, vector<128x32xbf16>, vector<16x32xf32> -> vector<16x32xf32>
    %11 = arith.addf %10, %9 : vector<16x32xf32>
    %12 = arith.truncf %11 : vector<16x32xf32> to vector<16x32xbf16>
    %c128 = arith.constant 128 : index
    %c0_7 = arith.constant 0 : index
    %13 = vector.load %arg2[%c128, %c0_7] : memref<352x128xbf16, #tpu.memory_space<vmem>>, vector<32x96xbf16>
    %c32 = arith.constant 32 : index
    %c0_8 = arith.constant 0 : index
    %14 = vector.load %arg3[%c32, %c0_8] : memref<42x128xf32, #tpu.memory_space<vmem>>, vector<1x96xf32>
    %cst_9 = arith.constant dense<0.000000e+00> : vector<16x96xf32>
    %15 = tpu.matmul %12, %13, %cst_9 {dimension_numbers = #tpu.dot_dimension_numbers<[1], [0], [0], [1], [0, 0, 1, 1], [], []>} : vector<16x32xbf16>, vector<32x96xbf16>, vector<16x96xf32> -> vector<16x96xf32>
    %16 = vector.broadcast %14 : vector<1x96xf32> to vector<16x96xf32>
    %17 = arith.addf %15, %16 : vector<16x96xf32>
    %c0_10 = arith.constant 0 : index
    %c0_11 = arith.constant 0 : index
    %18 = vector.load %arg1[%c0_10, %c0_11] : memref<1x16xi32, #tpu.memory_space<vmem>>, vector<1x16xi32>
    %19 = arith.sitofp %18 : vector<1x16xi32> to vector<1x16xf32>
    %c16 = arith.constant 16 : index
    %c0_12 = arith.constant 0 : index
    %20 = vector.load %arg3[%c16, %c0_12] : memref<42x128xf32, #tpu.memory_space<vmem>>, vector<16x16xf32>
    %cst_13 = arith.constant 1.000000e+00 : f32
    %21 = vector.broadcast %cst_13 : f32 to vector<1x16xf32>
    %22 = arith.subf %21, %19 : vector<1x16xf32>
    %cst_14 = arith.constant -1.000000e+09 : f32
    %23 = vector.broadcast %cst_14 : f32 to vector<1x16xf32>
    %24 = arith.mulf %22, %23 : vector<1x16xf32>
    %25 = vector.broadcast %24 : vector<1x16xf32> to vector<16x16xf32>
    %26 = arith.addf %20, %25 : vector<16x16xf32>
    %c35 = arith.constant 35 : index
    %c0_15 = arith.constant 0 : index
    %27 = vector.load %arg3[%c35, %c0_15] : memref<42x128xf32, #tpu.memory_space<vmem>>, vector<7x32xf32>
    %28 = vector.extract_strided_slice %17 {offsets = [0, 0], sizes = [16, 16], strides = [1, 1]} : vector<16x96xf32> to vector<16x16xf32>
    %29 = arith.truncf %28 : vector<16x16xf32> to vector<16x16xbf16>
    %30 = vector.extract_strided_slice %17 {offsets = [0, 32], sizes = [16, 16], strides = [1, 1]} : vector<16x96xf32> to vector<16x16xf32>
    %31 = arith.truncf %30 : vector<16x16xf32> to vector<16x16xbf16>
    %32 = vector.extract_strided_slice %17 {offsets = [0, 64], sizes = [16, 16], strides = [1, 1]} : vector<16x96xf32> to vector<16x16xf32>
    %33 = arith.truncf %32 : vector<16x16xf32> to vector<16x16xbf16>
    %cst_16 = arith.constant dense<0.000000e+00> : vector<16x16xf32>
    %34 = tpu.matmul %29, %31, %cst_16 {dimension_numbers = #tpu.dot_dimension_numbers<[1], [1], [0], [0], [0, 0, 1, 0], [], []>} : vector<16x16xbf16>, vector<16x16xbf16>, vector<16x16xf32> -> vector<16x16xf32>
    %cst_17 = arith.constant 2.500000e-01 : f32
    %35 = vector.broadcast %cst_17 : f32 to vector<16x16xf32>
    %36 = arith.mulf %34, %35 : vector<16x16xf32>
    %37 = arith.addf %36, %26 : vector<16x16xf32>
    %cst_18 = arith.constant dense<0xFF800000> : vector<16xf32>
    %38 = vector.multi_reduction <maximumf>, %37, %cst_18 [1] : vector<16x16xf32> to vector<16xf32>
    %39 = vector.shape_cast %38 : vector<16xf32> to vector<16x1xf32>
    %40 = vector.broadcast %39 : vector<16x1xf32> to vector<16x16xf32>
    %41 = arith.subf %37, %40 : vector<16x16xf32>
    %42 = math.exp %41 : vector<16x16xf32>
    %cst_19 = arith.constant dense<0.000000e+00> : vector<16xf32>
    %43 = vector.multi_reduction <add>, %42, %cst_19 [1] : vector<16x16xf32> to vector<16xf32>
    %44 = vector.shape_cast %43 : vector<16xf32> to vector<16x1xf32>
    %45 = tpu.reciprocal %44 {approx = true} : vector<16x1xf32> -> vector<16x1xf32>
    %46 = vector.broadcast %45 : vector<16x1xf32> to vector<16x16xf32>
    %47 = arith.mulf %42, %46 : vector<16x16xf32>
    %48 = arith.truncf %47 : vector<16x16xf32> to vector<16x16xbf16>
    %cst_20 = arith.constant dense<0.000000e+00> : vector<16x16xf32>
    %49 = tpu.matmul %48, %33, %cst_20 {dimension_numbers = #tpu.dot_dimension_numbers<[1], [0], [0], [1], [0, 0, 1, 1], [], []>} : vector<16x16xbf16>, vector<16x16xbf16>, vector<16x16xf32> -> vector<16x16xf32>
    %50 = vector.extract_strided_slice %17 {offsets = [0, 16], sizes = [16, 16], strides = [1, 1]} : vector<16x96xf32> to vector<16x16xf32>
    %51 = arith.truncf %50 : vector<16x16xf32> to vector<16x16xbf16>
    %52 = vector.extract_strided_slice %17 {offsets = [0, 48], sizes = [16, 16], strides = [1, 1]} : vector<16x96xf32> to vector<16x16xf32>
    %53 = arith.truncf %52 : vector<16x16xf32> to vector<16x16xbf16>
    %54 = vector.extract_strided_slice %17 {offsets = [0, 80], sizes = [16, 16], strides = [1, 1]} : vector<16x96xf32> to vector<16x16xf32>
    %55 = arith.truncf %54 : vector<16x16xf32> to vector<16x16xbf16>
    %cst_21 = arith.constant dense<0.000000e+00> : vector<16x16xf32>
    %56 = tpu.matmul %51, %53, %cst_21 {dimension_numbers = #tpu.dot_dimension_numbers<[1], [1], [0], [0], [0, 0, 1, 0], [], []>} : vector<16x16xbf16>, vector<16x16xbf16>, vector<16x16xf32> -> vector<16x16xf32>
    %cst_22 = arith.constant 2.500000e-01 : f32
    %57 = vector.broadcast %cst_22 : f32 to vector<16x16xf32>
    %58 = arith.mulf %56, %57 : vector<16x16xf32>
    %59 = arith.addf %58, %26 : vector<16x16xf32>
    %cst_23 = arith.constant dense<0xFF800000> : vector<16xf32>
    %60 = vector.multi_reduction <maximumf>, %59, %cst_23 [1] : vector<16x16xf32> to vector<16xf32>
    %61 = vector.shape_cast %60 : vector<16xf32> to vector<16x1xf32>
    %62 = vector.broadcast %61 : vector<16x1xf32> to vector<16x16xf32>
    %63 = arith.subf %59, %62 : vector<16x16xf32>
    %64 = math.exp %63 : vector<16x16xf32>
    %cst_24 = arith.constant dense<0.000000e+00> : vector<16xf32>
    %65 = vector.multi_reduction <add>, %64, %cst_24 [1] : vector<16x16xf32> to vector<16xf32>
    %66 = vector.shape_cast %65 : vector<16xf32> to vector<16x1xf32>
    %67 = tpu.reciprocal %66 {approx = true} : vector<16x1xf32> -> vector<16x1xf32>
    %68 = vector.broadcast %67 : vector<16x1xf32> to vector<16x16xf32>
    %69 = arith.mulf %64, %68 : vector<16x16xf32>
    %70 = arith.truncf %69 : vector<16x16xf32> to vector<16x16xbf16>
    %cst_25 = arith.constant dense<0.000000e+00> : vector<16x16xf32>
    %71 = tpu.matmul %70, %55, %cst_25 {dimension_numbers = #tpu.dot_dimension_numbers<[1], [0], [0], [1], [0, 0, 1, 1], [], []>} : vector<16x16xbf16>, vector<16x16xbf16>, vector<16x16xf32> -> vector<16x16xf32>
    %72 = tpu.concatenate %49, %71 in 1 : vector<16x16xf32>, vector<16x16xf32> -> vector<16x32xf32>
    %73 = arith.truncf %72 : vector<16x32xf32> to vector<16x32xbf16>
    %c160 = arith.constant 160 : index
    %c0_26 = arith.constant 0 : index
    %74 = vector.load %arg2[%c160, %c0_26] : memref<352x128xbf16, #tpu.memory_space<vmem>>, vector<32x32xbf16>
    %cst_27 = arith.constant dense<0.000000e+00> : vector<16x32xf32>
    %75 = tpu.matmul %73, %74, %cst_27 {dimension_numbers = #tpu.dot_dimension_numbers<[1], [0], [0], [1], [0, 0, 1, 1], [], []>} : vector<16x32xbf16>, vector<32x32xbf16>, vector<16x32xf32> -> vector<16x32xf32>
    %76 = vector.extract_strided_slice %27 {offsets = [0, 0], sizes = [1, 32], strides = [1, 1]} : vector<7x32xf32> to vector<1x32xf32>
    %77 = vector.broadcast %76 : vector<1x32xf32> to vector<16x32xf32>
    %78 = arith.addf %75, %77 : vector<16x32xf32>
    %79 = arith.addf %11, %78 : vector<16x32xf32>
    %80 = vector.extract_strided_slice %27 {offsets = [1, 0], sizes = [1, 32], strides = [1, 1]} : vector<7x32xf32> to vector<1x32xf32>
    %81 = vector.extract_strided_slice %27 {offsets = [2, 0], sizes = [1, 32], strides = [1, 1]} : vector<7x32xf32> to vector<1x32xf32>
    %cst_28 = arith.constant dense<0.000000e+00> : vector<16xf32>
    %82 = vector.multi_reduction <add>, %79, %cst_28 [1] : vector<16x32xf32> to vector<16xf32>
    %83 = vector.shape_cast %82 : vector<16xf32> to vector<16x1xf32>
    %cst_29 = arith.constant 3.200000e+01 : f32
    %84 = vector.broadcast %cst_29 : f32 to vector<16x1xf32>
    %85 = arith.divf %83, %84 : vector<16x1xf32>
    %86 = vector.broadcast %85 : vector<16x1xf32> to vector<16x32xf32>
    %87 = arith.subf %79, %86 : vector<16x32xf32>
    %88 = arith.mulf %87, %87 : vector<16x32xf32>
    %cst_30 = arith.constant dense<0.000000e+00> : vector<16xf32>
    %89 = vector.multi_reduction <add>, %88, %cst_30 [1] : vector<16x32xf32> to vector<16xf32>
    %90 = vector.shape_cast %89 : vector<16xf32> to vector<16x1xf32>
    %cst_31 = arith.constant 3.200000e+01 : f32
    %91 = vector.broadcast %cst_31 : f32 to vector<16x1xf32>
    %92 = arith.divf %90, %91 : vector<16x1xf32>
    %93 = vector.broadcast %85 : vector<16x1xf32> to vector<16x32xf32>
    %94 = arith.subf %79, %93 : vector<16x32xf32>
    %cst_32 = arith.constant 9.99999996E-13 : f32
    %95 = vector.broadcast %cst_32 : f32 to vector<16x1xf32>
    %96 = arith.addf %92, %95 : vector<16x1xf32>
    %97 = math.rsqrt %96 : vector<16x1xf32>
    %98 = vector.broadcast %97 : vector<16x1xf32> to vector<16x32xf32>
    %99 = arith.mulf %94, %98 : vector<16x32xf32>
    %100 = vector.broadcast %80 : vector<1x32xf32> to vector<16x32xf32>
    %101 = arith.mulf %99, %100 : vector<16x32xf32>
    %102 = vector.broadcast %81 : vector<1x32xf32> to vector<16x32xf32>
    %103 = arith.addf %101, %102 : vector<16x32xf32>
    %c192 = arith.constant 192 : index
    %c0_33 = arith.constant 0 : index
    %104 = vector.load %arg2[%c192, %c0_33] : memref<352x128xbf16, #tpu.memory_space<vmem>>, vector<32x64xbf16>
    %c33 = arith.constant 33 : index
    %c0_34 = arith.constant 0 : index
    %105 = vector.load %arg3[%c33, %c0_34] : memref<42x128xf32, #tpu.memory_space<vmem>>, vector<1x64xf32>
    %c224 = arith.constant 224 : index
    %c0_35 = arith.constant 0 : index
    %106 = vector.load %arg2[%c224, %c0_35] : memref<352x128xbf16, #tpu.memory_space<vmem>>, vector<64x32xbf16>
    %107 = arith.truncf %103 : vector<16x32xf32> to vector<16x32xbf16>
    %cst_36 = arith.constant dense<0.000000e+00> : vector<16x64xf32>
    %108 = tpu.matmul %107, %104, %cst_36 {dimension_numbers = #tpu.dot_dimension_numbers<[1], [0], [0], [1], [0, 0, 1, 1], [], []>} : vector<16x32xbf16>, vector<32x64xbf16>, vector<16x64xf32> -> vector<16x64xf32>
    %109 = vector.broadcast %105 : vector<1x64xf32> to vector<16x64xf32>
    %110 = arith.addf %108, %109 : vector<16x64xf32>
    %111 = arith.mulf %110, %110 : vector<16x64xf32>
    %112 = arith.mulf %110, %111 : vector<16x64xf32>
    %cst_37 = arith.constant 4.471500e-02 : f32
    %113 = vector.broadcast %cst_37 : f32 to vector<16x64xf32>
    %114 = arith.mulf %113, %112 : vector<16x64xf32>
    %115 = arith.addf %110, %114 : vector<16x64xf32>
    %cst_38 = arith.constant 0.797884583 : f32
    %116 = vector.broadcast %cst_38 : f32 to vector<16x64xf32>
    %117 = arith.mulf %116, %115 : vector<16x64xf32>
    %118 = math.tanh %117 : vector<16x64xf32>
    %cst_39 = arith.constant 1.000000e+00 : f32
    %119 = vector.broadcast %cst_39 : f32 to vector<16x64xf32>
    %120 = arith.addf %119, %118 : vector<16x64xf32>
    %cst_40 = arith.constant 5.000000e-01 : f32
    %121 = vector.broadcast %cst_40 : f32 to vector<16x64xf32>
    %122 = arith.mulf %121, %120 : vector<16x64xf32>
    %123 = arith.mulf %110, %122 : vector<16x64xf32>
    %124 = arith.truncf %123 : vector<16x64xf32> to vector<16x64xbf16>
    %cst_41 = arith.constant dense<0.000000e+00> : vector<16x32xf32>
    %125 = tpu.matmul %124, %106, %cst_41 {dimension_numbers = #tpu.dot_dimension_numbers<[1], [0], [0], [1], [0, 0, 1, 1], [], []>} : vector<16x64xbf16>, vector<64x32xbf16>, vector<16x32xf32> -> vector<16x32xf32>
    %126 = vector.extract_strided_slice %27 {offsets = [3, 0], sizes = [1, 32], strides = [1, 1]} : vector<7x32xf32> to vector<1x32xf32>
    %127 = vector.broadcast %126 : vector<1x32xf32> to vector<16x32xf32>
    %128 = arith.addf %125, %127 : vector<16x32xf32>
    %129 = arith.addf %103, %128 : vector<16x32xf32>
    %130 = vector.extract_strided_slice %27 {offsets = [4, 0], sizes = [1, 32], strides = [1, 1]} : vector<7x32xf32> to vector<1x32xf32>
    %131 = vector.extract_strided_slice %27 {offsets = [5, 0], sizes = [1, 32], strides = [1, 1]} : vector<7x32xf32> to vector<1x32xf32>
    %cst_42 = arith.constant dense<0.000000e+00> : vector<16xf32>
    %132 = vector.multi_reduction <add>, %129, %cst_42 [1] : vector<16x32xf32> to vector<16xf32>
    %133 = vector.shape_cast %132 : vector<16xf32> to vector<16x1xf32>
    %cst_43 = arith.constant 3.200000e+01 : f32
    %134 = vector.broadcast %cst_43 : f32 to vector<16x1xf32>
    %135 = arith.divf %133, %134 : vector<16x1xf32>
    %136 = vector.broadcast %135 : vector<16x1xf32> to vector<16x32xf32>
    %137 = arith.subf %129, %136 : vector<16x32xf32>
    %138 = arith.mulf %137, %137 : vector<16x32xf32>
    %cst_44 = arith.constant dense<0.000000e+00> : vector<16xf32>
    %139 = vector.multi_reduction <add>, %138, %cst_44 [1] : vector<16x32xf32> to vector<16xf32>
    %140 = vector.shape_cast %139 : vector<16xf32> to vector<16x1xf32>
    %cst_45 = arith.constant 3.200000e+01 : f32
    %141 = vector.broadcast %cst_45 : f32 to vector<16x1xf32>
    %142 = arith.divf %140, %141 : vector<16x1xf32>
    %143 = vector.broadcast %135 : vector<16x1xf32> to vector<16x32xf32>
    %144 = arith.subf %129, %143 : vector<16x32xf32>
    %cst_46 = arith.constant 9.99999996E-13 : f32
    %145 = vector.broadcast %cst_46 : f32 to vector<16x1xf32>
    %146 = arith.addf %142, %145 : vector<16x1xf32>
    %147 = math.rsqrt %146 : vector<16x1xf32>
    %148 = vector.broadcast %147 : vector<16x1xf32> to vector<16x32xf32>
    %149 = arith.mulf %144, %148 : vector<16x32xf32>
    %150 = vector.broadcast %130 : vector<1x32xf32> to vector<16x32xf32>
    %151 = arith.mulf %149, %150 : vector<16x32xf32>
    %152 = vector.broadcast %131 : vector<1x32xf32> to vector<16x32xf32>
    %153 = arith.addf %151, %152 : vector<16x32xf32>
    %c288 = arith.constant 288 : index
    %c0_47 = arith.constant 0 : index
    %154 = vector.load %arg2[%c288, %c0_47] : memref<352x128xbf16, #tpu.memory_space<vmem>>, vector<32x32xbf16>
    %c320 = arith.constant 320 : index
    %c0_48 = arith.constant 0 : index
    %155 = vector.load %arg2[%c320, %c0_48] : memref<352x128xbf16, #tpu.memory_space<vmem>>, vector<32x128xbf16>
    %c34 = arith.constant 34 : index
    %c0_49 = arith.constant 0 : index
    %156 = vector.load %arg3[%c34, %c0_49] : memref<42x128xf32, #tpu.memory_space<vmem>>, vector<1x128xf32>
    %157 = arith.truncf %153 : vector<16x32xf32> to vector<16x32xbf16>
    %cst_50 = arith.constant dense<0.000000e+00> : vector<16x32xf32>
    %158 = tpu.matmul %157, %154, %cst_50 {dimension_numbers = #tpu.dot_dimension_numbers<[1], [0], [0], [1], [0, 0, 1, 1], [], []>} : vector<16x32xbf16>, vector<32x32xbf16>, vector<16x32xf32> -> vector<16x32xf32>
    %159 = vector.extract_strided_slice %27 {offsets = [6, 0], sizes = [1, 32], strides = [1, 1]} : vector<7x32xf32> to vector<1x32xf32>
    %160 = vector.broadcast %159 : vector<1x32xf32> to vector<16x32xf32>
    %161 = arith.addf %158, %160 : vector<16x32xf32>
    %162 = math.tanh %161 : vector<16x32xf32>
    %163 = arith.truncf %162 : vector<16x32xf32> to vector<16x32xbf16>
    %cst_51 = arith.constant dense<0.000000e+00> : vector<16x128xf32>
    %164 = tpu.matmul %163, %155, %cst_51 {dimension_numbers = #tpu.dot_dimension_numbers<[1], [0], [0], [1], [0, 0, 1, 1], [], []>} : vector<16x32xbf16>, vector<32x128xbf16>, vector<16x128xf32> -> vector<16x128xf32>
    %165 = vector.broadcast %156 : vector<1x128xf32> to vector<16x128xf32>
    %166 = arith.addf %164, %165 : vector<16x128xf32>
    %c0_52 = arith.constant 0 : index
    %c0_53 = arith.constant 0 : index
    %167 = vector.load %arg4[%c0_52, %c0_53] : memref<16x128xf32, #tpu.memory_space<vmem>>, vector<16x128xf32>
    tpu.vector_store %arg4[%c0_52, %c0_53], %166 {strides = array<i32>} : memref<16x128xf32, #tpu.memory_space<vmem>>, vector<16x128xf32>,
    return
  }
}

</mosaic_0001>

<llo_original>
// kernel: tpu_custom_call.1
$region0: #{tpu_custom_call.1}
  #allocation0 [shape = 'u32[]', space=smem, size = 0x4, offset = 0x4, fixed_abs, tag = 'smem constant byte address 0x4 - core index']
  #allocation1 [shape = 'u32[72,128]{1,0:T(1,128)}', space=vmem, size = 0x9000, scoped, tag = 'internal scratch']
  %s0 = inlined_call_operand.vmem [shape: s32[16,1], index: 0, kind: input, shape index: {}]
  %s1 = inlined_call_operand.vmem [shape: s32[1,16], index: 1, kind: input, shape index: {}]
  %s2 = inlined_call_operand.hbm [shape: bf16[352,128], index: 2, kind: input, shape index: {}]
  %s3 = inlined_call_operand.hbm [shape: f32[42,128], index: 3, kind: input, shape index: {}]
  %s4 = inlined_call_operand.hbm [shape: f32[16,128], index: 4, kind: output, shape index: {}]
  %s5 = sld [smem:[#allocation0]]
  $region34: #{tpu_custom_call.1} parent=0
    _
  %s7 = ssub.s32 1, %s5
  %s8 = scalar_select 0, %s7, %s5
  $region1: #{tpu_custom_call.1} parent=0
    #allocation2 [shape = 'u8[90112]{0}', space=vmem, size = 0x16000, scoped, tag = 'input window, operand 2, single buffered']
    #allocation3 [shape = 's32[1]{0}', space=sflag, size = 0x4, scoped, tag = 'scoped memory for tpu_custom_call.1']
    #allocation4 [shape = 's32[1]{0}', space=sflag, size = 0x4, scoped, tag = 'scoped memory for tpu_custom_call.1']
    #allocation5 [shape = 'u8[24576]{0}', space=vmem, size = 0x6000, scoped, tag = 'input window, operand 3, single buffered']
    #allocation6 [shape = 's32[1]{0}', space=sflag, size = 0x4, scoped, tag = 'scoped memory for tpu_custom_call.1']
    #allocation7 [shape = 'u8[8192]{0}', space=vmem, size = 0x2000, scoped, tag = 'output window, operand 0, single buffered']
    %9 = vsyncpa [#allocation3], 0
    %10 = vsyncpa [#allocation6], 0
    %11 = vsyncpa [#allocation4], 0
    // Predicated region
    $region2: #{tpu_custom_call.1} parent=1 // pred_check
      _
    $region3: #{tpu_custom_call.1} parent=1 // pred_check_branch
      %13 = sbr.rel (0) target = $region5
    $region4: #{tpu_custom_call.1} parent=1 // pred_region
      _
    $region5: #{tpu_custom_call.1} parent=1 // pred_fallthru
      _
    // Predicated region
    $region6: #{tpu_custom_call.1} parent=1 // pred_check
      _
    $region7: #{tpu_custom_call.1} parent=1 // pred_check_branch
      %15 = sbr.rel (0) target = $region9
    $region8: #{tpu_custom_call.1} parent=1 // pred_region
      _
    $region9: #{tpu_custom_call.1} parent=1 // pred_fallthru
      _
    // Predicated region
    $region10: #{tpu_custom_call.1} parent=1 // pred_check
      _
    $region11: #{tpu_custom_call.1} parent=1 // pred_check_branch
      %17 = sbr.rel (0) target = $region13
    $region12: #{tpu_custom_call.1} parent=1 // pred_region
      %19 = vsyncadd [#allocation3], 0
      %s20 = sshll.u32 %s2, 4
      %s21 = int_to_ptr.hbm [resolvable:$true] %s20
      %s22 = sshll.u32 [#allocation2], 4
      %s23 = int_to_ptr.vmem [resolvable:$true] %s22
      %28 = dma.hbm_to_vmem [thread:$0]  %s21, 2816, %s23, [#allocation3], 64, 64, 4
    $region13: #{tpu_custom_call.1} parent=1 // pred_fallthru
      _
    // Predicated region
    $region14: #{tpu_custom_call.1} parent=1 // pred_check
      _
    $region15: #{tpu_custom_call.1} parent=1 // pred_check_branch
      %30 = sbr.rel (0) target = $region17
    $region16: #{tpu_custom_call.1} parent=1 // pred_region
      %32 = vsyncadd [#allocation6], 0
      %s33 = sshll.u32 %s3, 4
      %s34 = int_to_ptr.hbm [resolvable:$true] %s33
      %s35 = sshll.u32 [#allocation5], 4
      %s36 = int_to_ptr.vmem [resolvable:$true] %s35
      %41 = dma.hbm_to_vmem [thread:$0]  %s34, 768, %s36, [#allocation6], 128, 128, 8
    $region17: #{tpu_custom_call.1} parent=1 // pred_fallthru
      _
    // Predicated region
    $region18: #{tpu_custom_call.1} parent=1 // pred_check
      _
    $region19: #{tpu_custom_call.1} parent=1 // pred_check_branch
      %43 = sbr.rel (0) target = $region21
    $region20: #{tpu_custom_call.1} parent=1 // pred_region
      %45 = dma.done [#allocation3], 2816
    $region21: #{tpu_custom_call.1} parent=1 // pred_fallthru
      _
    // Predicated region
    $region22: #{tpu_custom_call.1} parent=1 // pred_check
      _
    $region23: #{tpu_custom_call.1} parent=1 // pred_check_branch
      %47 = sbr.rel (0) target = $region25
    $region24: #{tpu_custom_call.1} parent=1 // pred_region
      %49 = dma.done [#allocation6], 768
    $region25: #{tpu_custom_call.1} parent=1 // pred_fallthru
      _
    %v51 = vld [vmem:[%s0] sm:$0xff]
    %v52 = vld [vmem:[%s0 + $0x8] sm:$0xff]
    %v53 = vlaneseq
    %v54 = vand.u32 %v53, 127
    %55 = vset.pattern.permute.xlu0 0
    %56 = vperm.xlu0 %55, %v51
    %v57 = vpop.permute.xlu0 %56
    %58 = vset.pattern.permute.xlu0 0
    %59 = vperm.xlu0 %58, %v52
    %v60 = vpop.permute.xlu0 %59
    %vm61 = vcmp.eq.s32.totalorder %v54, %v57
    %vm62 = vcmp.eq.s32.totalorder %v54, %v60
    %v63 = vsel %vm61, 1.0, 0.0
    %v64 = vsel %vm62, 1.0, 0.0
    %v65 = vpack.c.bf16 %v64, %v63
    %v66 = vld [vmem:[#allocation2] sm:$0xf]
    %v67 = vld [vmem:[#allocation2 + $0x4] sm:$0xf]
    %v68 = vld [vmem:[#allocation2 + $0x8] sm:$0xf]
    %v69 = vld [vmem:[#allocation2 + $0xc] sm:$0xf]
    %v70 = vld [vmem:[#allocation2 + $0x10] sm:$0xf]
    %v71 = vld [vmem:[#allocation2 + $0x14] sm:$0xf]
    %v72 = vld [vmem:[#allocation2 + $0x18] sm:$0xf]
    %v73 = vld [vmem:[#allocation2 + $0x1c] sm:$0xf]
    %v74 = vld [vmem:[#allocation2 + $0x20] sm:$0xf]
    %v75 = vld [vmem:[#allocation2 + $0x24] sm:$0xf]
    %v76 = vld [vmem:[#allocation2 + $0x28] sm:$0xf]
    %v77 = vld [vmem:[#allocation2 + $0x2c] sm:$0xf]
    %v78 = vld [vmem:[#allocation2 + $0x30] sm:$0xf]
    %v79 = vld [vmem:[#allocation2 + $0x34] sm:$0xf]
    %v80 = vld [vmem:[#allocation2 + $0x38] sm:$0xf]
    %v81 = vld [vmem:[#allocation2 + $0x3c] sm:$0xf]
    %v82 = vld [vmem:[#allocation5] sm:$0xff]
    %v83 = vld [vmem:[#allocation5 + $0x8] sm:$0xff]
    %v100 = vunpack.c.l.b16 %v66
    %v101 = vunpack.c.l.b16 %v67
    %v102 = vunpack.c.l.b16 %v68
    %v103 = vunpack.c.l.b16 %v69
    %v104 = vunpack.c.l.b16 %v70
    %v105 = vunpack.c.l.b16 %v71
    %v106 = vunpack.c.l.b16 %v72
    %v107 = vunpack.c.l.b16 %v73
    %v108 = vunpack.c.l.b16 %v74
    %v109 = vunpack.c.l.b16 %v75
    %v110 = vunpack.c.l.b16 %v76
    %v111 = vunpack.c.l.b16 %v77
    %v112 = vunpack.c.l.b16 %v78
    %v113 = vunpack.c.l.b16 %v79
    %v114 = vunpack.c.l.b16 %v80
    %v115 = vunpack.c.l.b16 %v81
    %v116 = vpack.c.b16 %v101, %v100
    %v117 = vpack.c.b16 %v103, %v102
    %v118 = vpack.c.b16 %v105, %v104
    %v119 = vpack.c.b16 %v107, %v106
    %v120 = vpack.c.b16 %v109, %v108
    %v121 = vpack.c.b16 %v111, %v110
    %v122 = vpack.c.b16 %v113, %v112
    %v123 = vpack.c.b16 %v115, %v114
    %132 = vmatpush.bf16.msra.mxu0 %v123
    %133 = vmatpush.bf16.msra.mxu0 %v122
    %134 = vmatpush.bf16.msra.mxu0 %v121
    %135 = vmatpush.bf16.msra.mxu0 %v120
    %136 = vmatpush.bf16.msra.mxu0 %v119
    %137 = vmatpush.bf16.msra.mxu0 %v118
    %138 = vmatpush.bf16.msra.mxu0 %v117
    %139 = vmatpush.bf16.msra.mxu0 %v116
    %140 = vmatmul.bf16.gmra.mxu0 %v65
    %v141 = vpop.f32.mrf.mxu0
    %v142 = vadd.f32 %v82, %v141
    %v143 = vpop.f32.mrf.mxu0
    %v144 = vadd.f32 %v83, %v143
    %145 = vdwg.mxu0
    %v146 = vpack.c.bf16 %v144, %v142
    %v147 = vld [vmem:[#allocation2 + $0x40] sm:$0xf]
    %v148 = vld [vmem:[#allocation2 + $0x44] sm:$0xf]
    %v149 = vld [vmem:[#allocation2 + $0x48] sm:$0xf]
    %v150 = vld [vmem:[#allocation2 + $0x4c] sm:$0xf]
    %v151 = vld [vmem:[#allocation5 + $0x20] sm:$0x1]
    %v152 = vperm.slane %v151, 0
    %v157 = vunpack.c.l.b16 %v147
    %v158 = vunpack.c.l.b16 %v148
    %v159 = vunpack.c.l.b16 %v149
    %v160 = vunpack.c.l.b16 %v150
    %v161 = vpack.c.b16 %v158, %v157
    %v162 = vpack.c.b16 %v160, %v159
    %vm165 = vcmask 261120
    %v167 = vsel %vm165, %v146, 0
    %169 = vmatpush.bf16.msra.mxu0 0
    %170 = vmatpush.bf16.msra.mxu0 0
    %171 = vmatpush.bf16.msra.mxu0 0
    %172 = vmatpush.bf16.msra.mxu0 0
    %173 = vmatpush.bf16.msra.mxu0 0
    %174 = vmatpush.bf16.msra.mxu0 0
    %175 = vmatpush.bf16.msra.mxu0 %v162
    %176 = vmatpush.bf16.msra.mxu0 %v161
    %177 = vmatmul.bf16.gmra.mxu0 %v167
    %v178 = vpop.f32.mrf.mxu0
    %v179 = vadd.f32 %v152, %v178
    %v180 = vpop.f32.mrf.mxu0
    %v181 = vadd.f32 %v152, %v180
    %182 = vdwg.mxu0
    %v183 = vld [vmem:[%s1] sm:$0x1]
    %v184 = vcvt.s32.f32 %v183
    %v185 = vld [vmem:[#allocation5 + $0x10] sm:$0xff]
    %v186 = vld [vmem:[#allocation5 + $0x18] sm:$0xff]
    %v187 = vsub.f32 1.0, %v184
    %v188 = vmul.f32 %v187, -1e+09
    %v190 = vperm.slane %v188, 0
    %v192 = vadd.f32 %v185, %v190
    %v193 = vadd.f32 %v186, %v190
    %v194 = vld [vmem:[#allocation5 + $0x23] sm:$0x7f]
    %v195 = vpack.c.bf16 %v181, %v179
    %197 = vrot.lane.b32.xlu0 %v195, 96
    %v198 = vpop.permute.xlu0 %197
    %vm199 = vcmask 130048
    %v201 = vsel %vm199, %v195, 0
    %v204 = vsel %vm199, %v198, 0
    %206 = vmatpush.bf16.xpose.msra.mxu0 0
    %207 = vmatpush.bf16.xpose.msra.mxu0 0
    %208 = vmatpush.bf16.xpose.msra.mxu0 0
    %209 = vmatpush.bf16.xpose.msra.mxu0 0
    %210 = vmatpush.bf16.xpose.msra.mxu0 0
    %211 = vmatpush.bf16.xpose.msra.mxu0 0
    %212 = vmatpush.bf16.xpose.msra.mxu0 0
    %213 = vmatpush.bf16.xpose.msra.mxu0 %v204
    %214 = vmatmul.bf16.gmra.mxu0 %v201
    %v215 = vpop.f32.mrf.mxu0
    %v216 = vadd.f32 0.0, %v215
    %v217 = vpop.f32.mrf.mxu0
    %v218 = vadd.f32 0.0, %v217
    %219 = vdwg.mxu0
    %v220 = vmul.f32 %v216, 0.25
    %v221 = vmul.f32 %v218, 0.25
    %v222 = vadd.f32 %v220, %v192
    %v223 = vadd.f32 %v221, %v193
    %v224 = vsel %vm199, %v222, -inf
    %225 = vmax.xlane.f32.xlu0 %v224
    %v226 = vpop.xlane.xlu0 %225
    %v227 = vsel %vm199, %v223, -inf
    %228 = vmax.xlane.f32.xlu0 %v227
    %v229 = vpop.xlane.xlu0 %228
    %v230 = vsub.f32 %v222, %v226
    %v231 = vsub.f32 %v223, %v229
    %v232 = vmul.f32 %v230, 1.442695
    %v233 = vpow.pop %v232
    %v234 = vmul.f32 %v231, 1.442695
    %v235 = vpow.pop %v234
    %v236 = vsel %vm199, %v233, 0.0
    %237 = vadd.xlane.f32.xlu0 %v236
    %v238 = vpop.xlane.xlu0 %237
    %v239 = vsel %vm199, %v235, 0.0
    %240 = vadd.xlane.f32.xlu0 %v239
    %v241 = vpop.xlane.xlu0 %240
    %v242 = vrcp.pop %v238
    %v243 = vrcp.pop %v241
    %v244 = vmul.f32 %v233, %v242
    %v245 = vmul.f32 %v235, %v243
    %v246 = vpack.c.bf16 %v245, %v244
    %247 = vrot.lane.b32.xlu0 %v195, 64
    %v248 = vpop.permute.xlu0 %247
    %v251 = vsel %vm199, %v246, 0
    %253 = vmatpush.bf16.msra.mxu0 0
    %254 = vmatpush.bf16.msra.mxu0 0
    %255 = vmatpush.bf16.msra.mxu0 0
    %256 = vmatpush.bf16.msra.mxu0 0
    %257 = vmatpush.bf16.msra.mxu0 0
    %258 = vmatpush.bf16.msra.mxu0 0
    %259 = vmatpush.bf16.msra.mxu0 0
    %260 = vmatpush.bf16.msra.mxu0 %v248
    %261 = vmatmul.bf16.gmra.mxu0 %v251
    %v262 = vpop.f32.mrf.mxu0
    %v263 = vadd.f32 0.0, %v262
    %v264 = vpop.f32.mrf.mxu0
    %v265 = vadd.f32 0.0, %v264
    %266 = vdwg.mxu0
    %267 = vrot.lane.b32.xlu0 %v195, 112
    %v268 = vpop.permute.xlu0 %267
    %269 = vrot.lane.b32.xlu0 %v195, 80
    %v270 = vpop.permute.xlu0 %269
    %v272 = vsel %vm199, %v268, 0
    %v275 = vsel %vm199, %v270, 0
    %277 = vmatpush.bf16.xpose.msra.mxu0 0
    %278 = vmatpush.bf16.xpose.msra.mxu0 0
    %279 = vmatpush.bf16.xpose.msra.mxu0 0
    %280 = vmatpush.bf16.xpose.msra.mxu0 0
    %281 = vmatpush.bf16.xpose.msra.mxu0 0
    %282 = vmatpush.bf16.xpose.msra.mxu0 0
    %283 = vmatpush.bf16.xpose.msra.mxu0 0
    %284 = vmatpush.bf16.xpose.msra.mxu0 %v275
    %285 = vmatmul.bf16.gmra.mxu0 %v272
    %v286 = vpop.f32.mrf.mxu0
    %v287 = vadd.f32 0.0, %v286
    %v288 = vpop.f32.mrf.mxu0
    %v289 = vadd.f32 0.0, %v288
    %290 = vdwg.mxu0
    %v291 = vmul.f32 %v287, 0.25
    %v292 = vmul.f32 %v289, 0.25
    %v293 = vadd.f32 %v291, %v192
    %v294 = vadd.f32 %v292, %v193
    %v295 = vsel %vm199, %v293, -inf
    %296 = vmax.xlane.f32.xlu0 %v295
    %v297 = vpop.xlane.xlu0 %296
    %v298 = vsel %vm199, %v294, -inf
    %299 = vmax.xlane.f32.xlu0 %v298
    %v300 = vpop.xlane.xlu0 %299
    %v301 = vsub.f32 %v293, %v297
    %v302 = vsub.f32 %v294, %v300
    %v303 = vmul.f32 %v301, 1.442695
    %v304 = vpow.pop %v303
    %v305 = vmul.f32 %v302, 1.442695
    %v306 = vpow.pop %v305
    %v307 = vsel %vm199, %v304, 0.0
    %308 = vadd.xlane.f32.xlu0 %v307
    %v309 = vpop.xlane.xlu0 %308
    %v310 = vsel %vm199, %v306, 0.0
    %311 = vadd.xlane.f32.xlu0 %v310
    %v312 = vpop.xlane.xlu0 %311
    %v313 = vrcp.pop %v309
    %v314 = vrcp.pop %v312
    %v315 = vmul.f32 %v304, %v313
    %v316 = vmul.f32 %v306, %v314
    %v317 = vpack.c.bf16 %v316, %v315
    %318 = vrot.lane.b32.xlu0 %v195, 48
    %v319 = vpop.permute.xlu0 %318
    %v322 = vsel %vm199, %v317, 0
    %324 = vmatpush.bf16.msra.mxu0 0
    %325 = vmatpush.bf16.msra.mxu0 0
    %326 = vmatpush.bf16.msra.mxu0 0
    %327 = vmatpush.bf16.msra.mxu0 0
    %328 = vmatpush.bf16.msra.mxu0 0
    %329 = vmatpush.bf16.msra.mxu0 0
    %330 = vmatpush.bf16.msra.mxu0 0
    %331 = vmatpush.bf16.msra.mxu0 %v319
    %332 = vmatmul.bf16.gmra.mxu0 %v322
    %v333 = vpop.f32.mrf.mxu0
    %v334 = vadd.f32 0.0, %v333
    %v335 = vpop.f32.mrf.mxu0
    %v336 = vadd.f32 0.0, %v335
    %337 = vdwg.mxu0
    %340 = vrot.lane.b32.xlu0 %v334, 16
    %v341 = vpop.permute.xlu0 %340
    %342 = vrot.lane.b32.xlu0 %v336, 16
    %v343 = vpop.permute.xlu0 %342
    %v346 = vsel %vm199, %v263, %v341
    %v347 = vsel %vm199, %v265, %v343
    %v348 = vpack.c.bf16 %v347, %v346
    %v349 = vld [vmem:[#allocation2 + $0x50] sm:$0xf]
    %v350 = vld [vmem:[#allocation2 + $0x54] sm:$0xf]
    %v351 = vld [vmem:[#allocation2 + $0x58] sm:$0xf]
    %v352 = vld [vmem:[#allocation2 + $0x5c] sm:$0xf]
    %v353 = vperm.slane %v194, 0
    %v358 = vunpack.c.l.b16 %v349
    %v359 = vunpack.c.l.b16 %v350
    %v360 = vunpack.c.l.b16 %v351
    %v361 = vunpack.c.l.b16 %v352
    %v362 = vpack.c.b16 %v359, %v358
    %v363 = vpack.c.b16 %v361, %v360
    %v367 = vsel %vm165, %v348, 0
    %369 = vmatpush.bf16.msra.mxu0 0
    %370 = vmatpush.bf16.msra.mxu0 0
    %371 = vmatpush.bf16.msra.mxu0 0
    %372 = vmatpush.bf16.msra.mxu0 0
    %373 = vmatpush.bf16.msra.mxu0 0
    %374 = vmatpush.bf16.msra.mxu0 0
    %375 = vmatpush.bf16.msra.mxu0 %v363
    %376 = vmatpush.bf16.msra.mxu0 %v362
    %377 = vmatmul.bf16.gmra.mxu0 %v367
    %v378 = vpop.f32.mrf.mxu0
    %v379 = vadd.f32 %v353, %v378
    %v380 = vpop.f32.mrf.mxu0
    %v381 = vadd.f32 %v353, %v380
    %382 = vdwg.mxu0
    %v383 = vadd.f32 %v142, %v379
    %v384 = vadd.f32 %v144, %v381
    %v385 = vsel %vm165, %v383, 0.0
    %386 = vadd.xlane.f32.xlu0 %v385
    %v387 = vpop.xlane.xlu0 %386
    %v388 = vsel %vm165, %v384, 0.0
    %389 = vadd.xlane.f32.xlu0 %v388
    %v390 = vpop.xlane.xlu0 %389
    %v391 = vrcp.pop 32.0
    %v392 = vmul.f32 32.0, %v391
    %v393 = vsub.f32 1.0, %v392
    %v394 = vmul.f32 %v391, %v393
    %v395 = vadd.f32 %v391, %v394
    %vm396 = vweird.f32 %v391
    %v397 = vsel %vm396, %v391, %v395
    %v398 = vmul.f32 %v387, %v397
    %v399 = vmul.f32 %v390, %v397
    %v400 = vsub.f32 %v383, %v398
    %v401 = vsub.f32 %v384, %v399
    %v402 = vmul.f32 %v400, %v400
    %v403 = vmul.f32 %v401, %v401
    %v404 = vsel %vm165, %v402, 0.0
    %405 = vadd.xlane.f32.xlu0 %v404
    %v406 = vpop.xlane.xlu0 %405
    %v407 = vsel %vm165, %v403, 0.0
    %408 = vadd.xlane.f32.xlu0 %v407
    %v409 = vpop.xlane.xlu0 %408
    %v410 = vmul.f32 %v406, %v397
    %v411 = vmul.f32 %v409, %v397
    %v412 = vadd.f32 %v410, 1e-12
    %v413 = vadd.f32 %v411, 1e-12
    %v414 = vrsqrt.pop %v412
    %v415 = vmul.f32 %v414, %v412
    %v416 = vmul.f32 %v415, %v414
    %v417 = vmul.f32 0.5, %v416
    %v418 = vsub.f32 1.5, %v417
    %v419 = vmul.f32 %v414, %v418
    %vm420 = vweird.f32 %v412
    %vm421 = vweird.f32 %v414
    %vm422 = vmor %vm420, %vm421
    %v423 = vsel %vm422, %v414, %v419
    %v424 = vrsqrt.pop %v413
    %v425 = vmul.f32 %v424, %v413
    %v426 = vmul.f32 %v425, %v424
    %v427 = vmul.f32 0.5, %v426
    %v428 = vsub.f32 1.5, %v427
    %v429 = vmul.f32 %v424, %v428
    %vm430 = vweird.f32 %v413
    %vm431 = vweird.f32 %v424
    %vm432 = vmor %vm430, %vm431
    %v433 = vsel %vm432, %v424, %v429
    %v434 = vmul.f32 %v400, %v423
    %v435 = vmul.f32 %v401, %v433
    %v436 = vperm.slane %v194, 1
    %v437 = vmul.f32 %v434, %v436
    %v438 = vmul.f32 %v435, %v436
    %v439 = vperm.slane %v194, 2
    %v440 = vadd.f32 %v437, %v439
    %v441 = vadd.f32 %v438, %v439
    %v442 = vld [vmem:[#allocation2 + $0x60] sm:$0xf]
    %v443 = vld [vmem:[#allocation2 + $0x64] sm:$0xf]
    %v444 = vld [vmem:[#allocation2 + $0x68] sm:$0xf]
    %v445 = vld [vmem:[#allocation2 + $0x6c] sm:$0xf]
    %v446 = vld [vmem:[#allocation5 + $0x21] sm:$0x1]
    %v447 = vld [vmem:[#allocation2 + $0x70] sm:$0xf]
    %v448 = vld [vmem:[#allocation2 + $0x74] sm:$0xf]
    %v449 = vld [vmem:[#allocation2 + $0x78] sm:$0xf]
    %v450 = vld [vmem:[#allocation2 + $0x7c] sm:$0xf]
    %v451 = vld [vmem:[#allocation2 + $0x80] sm:$0xf]
    %v452 = vld [vmem:[#allocation2 + $0x84] sm:$0xf]
    %v453 = vld [vmem:[#allocation2 + $0x88] sm:$0xf]
    %v454 = vld [vmem:[#allocation2 + $0x8c] sm:$0xf]
    %v455 = vpack.c.bf16 %v441, %v440
    %v456 = vperm.slane %v446, 0
    %v461 = vunpack.c.l.b16 %v442
    %v462 = vunpack.c.l.b16 %v443
    %v463 = vunpack.c.l.b16 %v444
    %v464 = vunpack.c.l.b16 %v445
    %v465 = vpack.c.b16 %v462, %v461
    %v466 = vpack.c.b16 %v464, %v463
    %v470 = vsel %vm165, %v455, 0
    %472 = vmatpush.bf16.msra.mxu0 0
    %473 = vmatpush.bf16.msra.mxu0 0
    %474 = vmatpush.bf16.msra.mxu0 0
    %475 = vmatpush.bf16.msra.mxu0 0
    %476 = vmatpush.bf16.msra.mxu0 0
    %477 = vmatpush.bf16.msra.mxu0 0
    %478 = vmatpush.bf16.msra.mxu0 %v466
    %479 = vmatpush.bf16.msra.mxu0 %v465
    %480 = vmatmul.bf16.gmra.mxu0 %v470
    %v481 = vpop.f32.mrf.mxu0
    %v482 = vadd.f32 %v456, %v481
    %v483 = vpop.f32.mrf.mxu0
    %v484 = vadd.f32 %v456, %v483
    %485 = vdwg.mxu0
    %v486 = vmul.f32 %v482, %v482
    %v487 = vmul.f32 %v484, %v484
    %v488 = vmul.f32 %v482, %v486
    %v489 = vmul.f32 %v484, %v487
    %v490 = vmul.f32 %v488, 0.044715
    %v491 = vmul.f32 %v489, 0.044715
    %v492 = vadd.f32 %v482, %v490
    %v493 = vadd.f32 %v484, %v491
    %v494 = vmul.f32 %v492, 0.7978846
    %v495 = vmul.f32 %v493, 0.7978846
    %v496 = vtanh.pop %v494
    %v497 = vtanh.pop %v495
    %v498 = vadd.f32 %v496, 1.0
    %v499 = vadd.f32 %v497, 1.0
    %v500 = vmul.f32 %v498, 0.5
    %v501 = vmul.f32 %v499, 0.5
    %v502 = vmul.f32 %v482, %v500
    %v503 = vmul.f32 %v484, %v501
    %v504 = vpack.c.bf16 %v503, %v502
    %v505 = vperm.slane %v194, 3
    %v514 = vunpack.c.l.b16 %v447
    %v515 = vunpack.c.l.b16 %v448
    %v516 = vunpack.c.l.b16 %v449
    %v517 = vunpack.c.l.b16 %v450
    %v518 = vunpack.c.l.b16 %v451
    %v519 = vunpack.c.l.b16 %v452
    %v520 = vunpack.c.l.b16 %v453
    %v521 = vunpack.c.l.b16 %v454
    %v522 = vpack.c.b16 %v515, %v514
    %v523 = vpack.c.b16 %v517, %v516
    %v524 = vpack.c.b16 %v519, %v518
    %v525 = vpack.c.b16 %v521, %v520
    %vm530 = vcmask 523264
    %v532 = vsel %vm530, %v504, 0
    %534 = vmatpush.bf16.msra.mxu0 0
    %535 = vmatpush.bf16.msra.mxu0 0
    %536 = vmatpush.bf16.msra.mxu0 0
    %537 = vmatpush.bf16.msra.mxu0 0
    %538 = vmatpush.bf16.msra.mxu0 %v525
    %539 = vmatpush.bf16.msra.mxu0 %v524
    %540 = vmatpush.bf16.msra.mxu0 %v523
    %541 = vmatpush.bf16.msra.mxu0 %v522
    %542 = vmatmul.bf16.gmra.mxu0 %v532
    %v543 = vpop.f32.mrf.mxu0
    %v544 = vadd.f32 %v505, %v543
    %v545 = vpop.f32.mrf.mxu0
    %v546 = vadd.f32 %v505, %v545
    %547 = vdwg.mxu0
    %v548 = vadd.f32 %v440, %v544
    %v549 = vadd.f32 %v441, %v546
    %v550 = vsel %vm165, %v548, 0.0
    %551 = vadd.xlane.f32.xlu0 %v550
    %v552 = vpop.xlane.xlu0 %551
    %v553 = vsel %vm165, %v549, 0.0
    %554 = vadd.xlane.f32.xlu0 %v553
    %v555 = vpop.xlane.xlu0 %554
    %v556 = vmul.f32 %v552, %v397
    %v557 = vmul.f32 %v555, %v397
    %v558 = vsub.f32 %v548, %v556
    %v559 = vsub.f32 %v549, %v557
    %v560 = vmul.f32 %v558, %v558
    %v561 = vmul.f32 %v559, %v559
    %v562 = vsel %vm165, %v560, 0.0
    %563 = vadd.xlane.f32.xlu0 %v562
    %v564 = vpop.xlane.xlu0 %563
    %v565 = vsel %vm165, %v561, 0.0
    %566 = vadd.xlane.f32.xlu0 %v565
    %v567 = vpop.xlane.xlu0 %566
    %v568 = vmul.f32 %v564, %v397
    %v569 = vmul.f32 %v567, %v397
    %v570 = vadd.f32 %v568, 1e-12
    %v571 = vadd.f32 %v569, 1e-12
    %v572 = vrsqrt.pop %v570
    %v573 = vmul.f32 %v572, %v570
    %v574 = vmul.f32 %v573, %v572
    %v575 = vmul.f32 0.5, %v574
    %v576 = vsub.f32 1.5, %v575
    %v577 = vmul.f32 %v572, %v576
    %vm578 = vweird.f32 %v570
    %vm579 = vweird.f32 %v572
    %vm580 = vmor %vm578, %vm579
    %v581 = vsel %vm580, %v572, %v577
    %v582 = vrsqrt.pop %v571
    %v583 = vmul.f32 %v582, %v571
    %v584 = vmul.f32 %v583, %v582
    %v585 = vmul.f32 0.5, %v584
    %v586 = vsub.f32 1.5, %v585
    %v587 = vmul.f32 %v582, %v586
    %vm588 = vweird.f32 %v571
    %vm589 = vweird.f32 %v582
    %vm590 = vmor %vm588, %vm589
    %v591 = vsel %vm590, %v582, %v587
    %v592 = vmul.f32 %v558, %v581
    %v593 = vmul.f32 %v559, %v591
    %v594 = vperm.slane %v194, 4
    %v595 = vmul.f32 %v592, %v594
    %v596 = vmul.f32 %v593, %v594
    %v597 = vperm.slane %v194, 5
    %v598 = vadd.f32 %v595, %v597
    %v599 = vadd.f32 %v596, %v597
    %v600 = vld [vmem:[#allocation2 + $0x90] sm:$0xf]
    %v601 = vld [vmem:[#allocation2 + $0x94] sm:$0xf]
    %v602 = vld [vmem:[#allocation2 + $0x98] sm:$0xf]
    %v603 = vld [vmem:[#allocation2 + $0x9c] sm:$0xf]
    %v604 = vld [vmem:[#allocation2 + $0xa0] sm:$0xf]
    %v605 = vld [vmem:[#allocation2 + $0xa4] sm:$0xf]
    %v606 = vld [vmem:[#allocation2 + $0xa8] sm:$0xf]
    %v607 = vld [vmem:[#allocation2 + $0xac] sm:$0xf]
    %v608 = vld [vmem:[#allocation5 + $0x22] sm:$0x1]
    %v609 = vpack.c.bf16 %v599, %v598
    %v610 = vperm.slane %v194, 6
    %v615 = vunpack.c.l.b16 %v600
    %v616 = vunpack.c.l.b16 %v601
    %v617 = vunpack.c.l.b16 %v602
    %v618 = vunpack.c.l.b16 %v603
    %v619 = vpack.c.b16 %v616, %v615
    %v620 = vpack.c.b16 %v618, %v617
    %v624 = vsel %vm165, %v609, 0
    %626 = vmatpush.bf16.msra.mxu0 0
    %627 = vmatpush.bf16.msra.mxu0 0
    %628 = vmatpush.bf16.msra.mxu0 0
    %629 = vmatpush.bf16.msra.mxu0 0
    %630 = vmatpush.bf16.msra.mxu0 0
    %631 = vmatpush.bf16.msra.mxu0 0
    %632 = vmatpush.bf16.msra.mxu0 %v620
    %633 = vmatpush.bf16.msra.mxu0 %v619
    %634 = vmatmul.bf16.gmra.mxu0 %v624
    %v635 = vpop.f32.mrf.mxu0
    %v636 = vadd.f32 %v610, %v635
    %v637 = vpop.f32.mrf.mxu0
    %v638 = vadd.f32 %v610, %v637
    %639 = vdwg.mxu0
    %v640 = vtanh.pop %v636
    %v641 = vtanh.pop %v638
    %v642 = vpack.c.bf16 %v641, %v640
    %v643 = vperm.slane %v608, 0
    %v648 = vunpack.c.l.b16 %v604
    %v649 = vunpack.c.l.b16 %v605
    %v650 = vunpack.c.l.b16 %v606
    %v651 = vunpack.c.l.b16 %v607
    %v652 = vpack.c.b16 %v649, %v648
    %v653 = vpack.c.b16 %v651, %v650
    %v657 = vsel %vm165, %v642, 0
    %659 = vmatpush.bf16.msra.mxu0 0
    %660 = vmatpush.bf16.msra.mxu0 0
    %661 = vmatpush.bf16.msra.mxu0 0
    %662 = vmatpush.bf16.msra.mxu0 0
    %663 = vmatpush.bf16.msra.mxu0 0
    %664 = vmatpush.bf16.msra.mxu0 0
    %665 = vmatpush.bf16.msra.mxu0 %v653
    %666 = vmatpush.bf16.msra.mxu0 %v652
    %667 = vmatmul.bf16.gmra.mxu0 %v657
    %v668 = vpop.f32.mrf.mxu0
    %v669 = vadd.f32 %v643, %v668
    %v670 = vpop.f32.mrf.mxu0
    %v671 = vadd.f32 %v643, %v670
    %672 = vdwg.mxu0
    %673 = vst [vmem:[#allocation7] sm:$0xff] %v669
    %674 = vst [vmem:[#allocation7 + $0x8] sm:$0xff] %v671
    // Predicated region
    $region26: #{tpu_custom_call.1} parent=1 // pred_check
      _
    $region27: #{tpu_custom_call.1} parent=1 // pred_check_branch
      %676 = sbr.rel (0) target = $region29
    $region28: #{tpu_custom_call.1} parent=1 // pred_region
      %678 = vsyncadd [#allocation4], 0
      %s679 = sshll.u32 [#allocation7], 4
      %s680 = int_to_ptr.vmem [resolvable:$true] %s679
      %s681 = sshll.u32 %s4, 4
      %s682 = int_to_ptr.hbm [resolvable:$true] %s681
      %687 = dma.vmem_to_hbm [thread:$0]  %s680, 256, %s682, [#allocation4], 128, 128, 8
    $region29: #{tpu_custom_call.1} parent=1 // pred_fallthru
      _
    // Predicated region
    $region30: #{tpu_custom_call.1} parent=1 // pred_check
      _
    $region31: #{tpu_custom_call.1} parent=1 // pred_check_branch
      %689 = sbr.rel (0) target = $region33
    $region32: #{tpu_custom_call.1} parent=1 // pred_region
      %691 = dma.done [#allocation4], 256
    $region33: #{tpu_custom_call.1} parent=1 // pred_fallthru
      _
    %692 = vsyncpa [#allocation3], 1
    %693 = vsyncpa [#allocation6], 1
    %694 = vsyncpa [#allocation4], 1

</llo_original>
